<compile_context>
chip_gen: v6e
topology: v6e:2x2x1
jax: 0.10.0
libtpu: 0.0.40
codegen_flags: <defaults>
</compile_context>

<pallas_src>
import functools

import jax
import jax.numpy as jnp
from jax import lax
from jax.experimental import pallas as pl
from jax.experimental.pallas import tpu as pltpu


# ----------------------------------------------------------------------------
# Parameter / buffer construction (glue, plain JAX): the fixed P table.
# ----------------------------------------------------------------------------
def build_pe_table(num_hiddens: int, max_len: int = 1000) -> jnp.ndarray:
    """Builds P of shape (1, max_len, num_hiddens), matching the torch code."""
    pos = jnp.arange(max_len, dtype=jnp.float32).reshape(-1, 1)            # (max_len, 1)
    div = jnp.power(
        10000.0,
        jnp.arange(0, num_hiddens, 2, dtype=jnp.float32) / num_hiddens,    # (H/2,)
    )
    X = pos / div                                                           # (max_len, H/2)
    P = jnp.zeros((1, max_len, num_hiddens), dtype=jnp.float32)
    P = P.at[:, :, 0::2].set(jnp.sin(X))
    P = P.at[:, :, 1::2].set(jnp.cos(X))
    return P


# ----------------------------------------------------------------------------
# Tile-size selection (host-side, runs once per shape).
# ----------------------------------------------------------------------------
def _largest_divisor_multiple(n: int, base: int, max_val: int):
    """Largest d with d | n, d % base == 0, d <= max_val.  None if no such d."""
    best = None
    d = base
    while d <= min(n, max_val):
        if n % d == 0:
            best = d
        d += base
    return best


def _choose_tiles(B: int, N: int, esize: int):
    """Pick (TB, TL) block dims for the flattened (B, N) slab."""
    block_budget = 2 * 1024 * 1024  # ~2 MiB per x block; fits v5e/v6e/v7x VMEM
    # Column tile: multiple of 128 dividing N (lane-dense), within budget.
    max_tl = max(128, block_budget // (esize * max(B, 1)))
    tl = _largest_divisor_multiple(N, 128, min(N, max_tl))
    if tl is None:
        tl = _largest_divisor_multiple(N, 128, N)
    if tl is None:
        tl = N  # full row == full array dim: always a legal block shape
    # Batch tile: keep full B (legal: equals full dim); shrink only if needed.
    tb = B
    if tb * tl * esize > block_budget and B % 8 == 0:
        max_tb = max(8, block_budget // (esize * tl))
        cand = _largest_divisor_multiple(B, 8, min(B, max_tb))
        if cand is not None:
            tb = cand
    return tb, tl


# ----------------------------------------------------------------------------
# Pallas kernel: elementwise add of positional encodings (+ optional dropout).
# ----------------------------------------------------------------------------
def _pos_enc_kernel(seed_ref, x_ref, p_ref, o_ref, *, n_cols, dropout_rate,
                    apply_dropout):
    # x_ref: (TB, TL) tile of the flattened (B, S*H) input.
    # p_ref: (1, TL) tile of the flattened positional table (broadcast over B).
    y = x_ref[...] + p_ref[...]  # broadcast add along the sublane (batch) axis

    if apply_dropout:
        tb, tl = x_ref.shape
        bi = pl.program_id(0)
        bj = pl.program_id(1)
        row0 = (bi * tb).astype(jnp.uint32)
        col0 = (bj * tl).astype(jnp.uint32)
        rows = lax.broadcasted_iota(jnp.uint32, (tb, tl), 0) + row0
        cols = lax.broadcasted_iota(jnp.uint32, (tb, tl), 1) + col0
        # Global element id -> dropout mask is independent of the tiling.
        idx = rows * jnp.uint32(n_cols) + cols
        seed = seed_ref[0].astype(jnp.uint32)
        # Counter-based hash (lowbias32-style finalizer): pure VPU integer ops.
        h = idx ^ (seed * jnp.uint32(0x9E3779B9))
        h = h ^ (h >> 16)
        h = h * jnp.uint32(0x7FEB352D)
        h = h ^ (h >> 15)
        h = h * jnp.uint32(0x846CA68B)
        h = h ^ (h >> 16)
        # Inverted dropout: keep with prob (1 - rate), scale kept values.
        threshold = jnp.uint32(min(int(dropout_rate * (2 ** 32)), 2 ** 32 - 1))
        scale = jnp.asarray(1.0 / (1.0 - dropout_rate), dtype=y.dtype)
        y = jnp.where(h >= threshold, y * scale, jnp.zeros((), y.dtype))

    o_ref[...] = y.astype(o_ref.dtype)


def positional_encoding_forward(
    x: jnp.ndarray,
    P: jnp.ndarray,
    *,
    dropout_rate: float = 0.0,
    training: bool = False,
    seed: int = 0,
) -> jnp.ndarray:
    """Applies out = dropout(x + P[:, :S, :]) with a Pallas TPU kernel.

    x: (B, S, H).  P: (1, max_len, H) float32 (cast to x.dtype for the add).
    """
    B, S, H = x.shape
    assert P.shape[0] == 1 and P.shape[2] == H and P.shape[1] >= S
    dropout_rate = float(dropout_rate)
    assert 0.0 <= dropout_rate <= 1.0
    if training and dropout_rate >= 1.0:
        # Degenerate case: everything dropped.
        return jnp.zeros_like(x)
    apply_dropout = bool(training) and dropout_rate > 0.0

    N = S * H
    xf = x.reshape(B, N)                                   # lane-dense slab
    pf = P[:, :S, :].astype(x.dtype).reshape(1, N)          # matches each row of xf

    esize = jnp.dtype(x.dtype).itemsize
    TB, TL = _choose_tiles(B, N, esize)
    grid = (B // TB, N // TL)

    # Seed travels through SMEM (scalar prefetch) -> no recompile per seed.
    seed_arr = jnp.asarray([seed], dtype=jnp.int32)

    kernel = functools.partial(
        _pos_enc_kernel,
        n_cols=N,
        dropout_rate=dropout_rate,
        apply_dropout=apply_dropout,
    )

    out = pl.pallas_call(
        kernel,
        out_shape=jax.ShapeDtypeStruct((B, N), x.dtype),
        grid_spec=pltpu.PrefetchScalarGridSpec(
            num_scalar_prefetch=1,
            grid=grid,
            in_specs=[
                # x tile: one (TB, TL) block per grid step.
                pl.BlockSpec((TB, TL), lambda i, j, seed_ref: (i, j)),
                # Positional table: shared across the batch axis.
                pl.BlockSpec((1, TL), lambda i, j, seed_ref: (0, j)),
            ],
            out_specs=pl.BlockSpec((TB, TL), lambda i, j, seed_ref: (i, j)),
        ),
        compiler_params=pltpu.CompilerParams(
            dimension_semantics=("parallel", "parallel"),
        ),
    )(seed_arr, xf, pf)

    return out.reshape(B, S, H)


# ----------------------------------------------------------------------------
# Demo / smoke test
# ----------------------------------------------------------------------------
if __name__ == "__main__":
    # Small shapes consistent with the module: batch=2, seq=8, num_hiddens=32.
    B, S, H = 2, 8, 32
    max_len = 64
    dropout = 0.1

    key = jax.random.PRNGKey(0)
    x = jax.random.normal(key, (B, S, H), dtype=jnp.float32)

    P = build_pe_table(H, max_len)

    # Eval-mode forward (dropout is identity) — check against plain JAX ref.
    out_eval = positional_encoding_forward(
        x, P, dropout_rate=dropout, training=False
    )
    out_eval = jax.block_until_ready(out_eval)
    ref = x + P[:, :S, :]
    assert out_eval.shape == (B, S, H)
    assert jnp.allclose(out_eval, ref, atol=1e-6), "mismatch vs reference add"

    # Training-mode forward (deterministic seeded in-kernel dropout).
    out_train = positional_encoding_forward(
        x, P, dropout_rate=dropout, training=True, seed=1234
    )
    out_train = jax.block_until_ready(out_train)
    assert out_train.shape == (B, S, H)
    # Every element is either exactly dropped (0) or the kept value scaled by
    # 1/(1-rate); the mask itself uses a different RNG than torch (expected).
    scale = 1.0 / (1.0 - dropout)
    close_kept = jnp.isclose(out_train, ref * scale, atol=1e-5)
    close_drop = jnp.isclose(out_train, 0.0, atol=1e-7)
    assert bool(jnp.all(close_kept | close_drop)), "dropout output malformed"

    print("KERNEL_OK")
</pallas_src>

<mosaic_0001>
module attributes {stable_mosaic.version = 11 : i64} {
  func.func @_pos_enc_kernel(%arg0: i32, %arg1: i32, %arg2: memref<1xi32, #tpu.memory_space<smem>>, %arg3: memref<2x256xf32, #tpu.memory_space<vmem>>, %arg4: memref<1x256xf32, #tpu.memory_space<vmem>>, %arg5: memref<2x256xf32, #tpu.memory_space<vmem>>) attributes {dimension_semantics = [#tpu.dimension_semantics<parallel>, #tpu.dimension_semantics<parallel>], iteration_bounds = array<i64: 1, 1>, scalar_prefetch = 1 : i64, scratch_operands = 0 : i64, tpu.core_type = #tpu.core_type<tc>, window_params = [{transform_indices = @transform_0, window_bounds = array<i64: 2, 256>}, {transform_indices = @transform_1, window_bounds = array<i64: 1, 256>}, {transform_indices = @transform_2, window_bounds = array<i64: 2, 256>}]} {
    %c0 = arith.constant 0 : index
    %c0_0 = arith.constant 0 : index
    %0 = vector.load %arg3[%c0, %c0_0] : memref<2x256xf32, #tpu.memory_space<vmem>>, vector<2x256xf32>
    %c0_1 = arith.constant 0 : index
    %c0_2 = arith.constant 0 : index
    %1 = vector.load %arg4[%c0_1, %c0_2] : memref<1x256xf32, #tpu.memory_space<vmem>>, vector<1x256xf32>
    %2 = vector.broadcast %1 : vector<1x256xf32> to vector<2x256xf32>
    %3 = arith.addf %0, %2 : vector<2x256xf32>
    %c0_3 = arith.constant 0 : index
    %c0_4 = arith.constant 0 : index
    %4 = vector.load %arg5[%c0_3, %c0_4] : memref<2x256xf32, #tpu.memory_space<vmem>>, vector<2x256xf32>
    tpu.vector_store %arg5[%c0_3, %c0_4], %3 {strides = array<i32>} : memref<2x256xf32, #tpu.memory_space<vmem>>, vector<2x256xf32>,
    return
  }
  func.func @transform_0(%arg0: i32, %arg1: i32, %arg2: memref<1xi32, #tpu.memory_space<smem>>) -> (i32, i32) {
    %c0_i32 = arith.constant 0 : i32
    return %arg0, %arg1 : i32, i32
  }
  func.func @transform_1(%arg0: i32, %arg1: i32, %arg2: memref<1xi32, #tpu.memory_space<smem>>) -> (i32, i32) {
    %c0_i32 = arith.constant 0 : i32
    %c0_i32_0 = arith.constant 0 : i32
    return %c0_i32, %arg1 : i32, i32
  }
  func.func @transform_2(%arg0: i32, %arg1: i32, %arg2: memref<1xi32, #tpu.memory_space<smem>>) -> (i32, i32) {
    %c0_i32 = arith.constant 0 : i32
    return %arg0, %arg1 : i32, i32
  }
}

</mosaic_0001>

<llo_original>
// kernel: tpu_custom_call.1
$region0: #{tpu_custom_call.1}
  #allocation0 [shape = 'u32[]', space=smem, size = 0x4, offset = 0x4, fixed_abs, tag = 'smem constant byte address 0x4 - core index']
  #allocation1 [shape = 'u32[144,128]{1,0:T(1,128)}', space=vmem, size = 0x12000, scoped, tag = 'internal scratch']
  #allocation2 [shape = 's32[1]{0}', space=sflag, size = 0x4, scoped, tag = 'scoped memory for tpu_custom_call.1']
  #allocation3 [shape = 's32[1]{0:T(128)S(6)}', space=smem, size = 0x200, scoped, tag = 'prefetched SMEM operand 0']
  %s0 = inlined_call_operand.<no memory space> [shape: s32[1], index: 0, kind: input, shape index: {}]
  %s1 = inlined_call_operand.hbm [shape: f32[2,256], index: 1, kind: input, shape index: {}]
  %s2 = inlined_call_operand.vmem [shape: f32[1,256], index: 2, kind: input, shape index: {}]
  %s3 = inlined_call_operand.hbm [shape: f32[2,256], index: 3, kind: output, shape index: {}]
  %s4 = sld [smem:[#allocation0]]
  $region22: #{tpu_custom_call.1} parent=0
    _
  %s6 = ssub.s32 1, %s4
  %s7 = scalar_select 0, %s6, %s4
  %8 = sst [smem:[#allocation3]] %s0
  $region1: #{tpu_custom_call.1} parent=0
    #allocation4 [shape = 'u8[2048]{0}', space=vmem, size = 0x800, scoped, tag = 'input window, operand 1, single buffered']
    #allocation5 [shape = 's32[1]{0}', space=sflag, size = 0x4, scoped, tag = 'scoped memory for tpu_custom_call.1']
    #allocation6 [shape = 's32[1]{0}', space=sflag, size = 0x4, scoped, tag = 'scoped memory for tpu_custom_call.1']
    #allocation7 [shape = 'u8[2048]{0}', space=vmem, size = 0x800, scoped, tag = 'output window, operand 0, single buffered']
    %9 = vsyncpa [#allocation5], 0
    %10 = vsyncpa [#allocation6], 0
    // Predicated region
    $region2: #{tpu_custom_call.1} parent=1 // pred_check
      _
    $region3: #{tpu_custom_call.1} parent=1 // pred_check_branch
      %12 = sbr.rel (0) target = $region5
    $region4: #{tpu_custom_call.1} parent=1 // pred_region
      %s14 = ssub.s32 64, 64
      %15 = vsyncadd [#allocation5], %s14
      %s17 = sshll.u32 [#allocation4], 4
      %s18 = int_to_ptr.vmem [resolvable:$true] %s17
      %20 = dma.hbm_to_vmem [thread:$0]  %s1, 64, %s18, [#allocation5]
    $region5: #{tpu_custom_call.1} parent=1 // pred_fallthru
      _
    // Predicated region
    $region6: #{tpu_custom_call.1} parent=1 // pred_check
      _
    $region7: #{tpu_custom_call.1} parent=1 // pred_check_branch
      %22 = sbr.rel (0) target = $region9
    $region8: #{tpu_custom_call.1} parent=1 // pred_region
      _
    $region9: #{tpu_custom_call.1} parent=1 // pred_fallthru
      _
    // Predicated region
    $region10: #{tpu_custom_call.1} parent=1 // pred_check
      _
    $region11: #{tpu_custom_call.1} parent=1 // pred_check_branch
      %24 = sbr.rel (0) target = $region13
    $region12: #{tpu_custom_call.1} parent=1 // pred_region
      %25 = dma.done [#allocation5], 64
    $region13: #{tpu_custom_call.1} parent=1 // pred_fallthru
      _
    %v26 = vld [vmem:[#allocation4] sm:$0xf]
    %v27 = vld [vmem:[%s2] sm:$0x3]
    %v29 = vlaneseq
    %v30 = vshrl.u32 %v29, 7
    %v31 = vsub.s32 0, %v30
    %v32 = vrot.slane %v27, %v31
    %v33 = vlaneseq
    %v34 = vshrl.u32 %v33, 7
    %v35 = vsub.s32 1, %v34
    %v36 = vrot.slane %v27, %v35
    %v37 = vcombine.low %v32, %v36
    %v39 = vunpack.c.l.s4 1983009808
    %v40 = vunpack.c.0.s8 %v39
    %v41 = vlaneseq
    %v42 = vshrl.u32 %v41, 7
    %v43 = vsub.s32 %v40, %v42
    %v44 = vrot.slane %v37, %v43
    %v46 = vadd.f32 %v26, %v44
    %47 = vst [vmem:[#allocation7] sm:$0xf] %v46
    // Predicated region
    $region14: #{tpu_custom_call.1} parent=1 // pred_check
      _
    $region15: #{tpu_custom_call.1} parent=1 // pred_check_branch
      %49 = sbr.rel (0) target = $region17
    $region16: #{tpu_custom_call.1} parent=1 // pred_region
      %s51 = ssub.s32 64, 64
      %52 = vsyncadd [#allocation6], %s51
      %s54 = sshll.u32 [#allocation7], 4
      %s55 = int_to_ptr.vmem [resolvable:$true] %s54
      %57 = dma.vmem_to_hbm [thread:$0]  %s55, 64, %s3, [#allocation6]
    $region17: #{tpu_custom_call.1} parent=1 // pred_fallthru
      _
    // Predicated region
    $region18: #{tpu_custom_call.1} parent=1 // pred_check
      _
    $region19: #{tpu_custom_call.1} parent=1 // pred_check_branch
      %59 = sbr.rel (0) target = $region21
    $region20: #{tpu_custom_call.1} parent=1 // pred_region
      %60 = dma.done [#allocation6], 64
    $region21: #{tpu_custom_call.1} parent=1 // pred_fallthru
      _
    %61 = vsyncpa [#allocation5], 1
    %62 = vsyncpa [#allocation6], 1

</llo_original>
